<compile_context>
chip_gen: v5e
topology: v5e:2x2
jax: 0.10.0
libtpu: 0.0.40
codegen_flags: <defaults>
</compile_context>

<pallas_src>
import functools

import jax
import jax.numpy as jnp
from jax.experimental import pallas as pl
from jax.experimental.pallas import tpu as pltpu


def _round_up(x: int, m: int) -> int:
    return ((x + m - 1) // m) * m


def qnet_kernel(x_ref, w1_ref, b1_ref, w2_ref, b2_ref, o_ref):
    # linear1 (MXU, f32 accumulation) + bias + ReLU in f32 (VPU)
    h = jnp.dot(x_ref[...], w1_ref[...], preferred_element_type=jnp.float32)
    h = jnp.maximum(h + b1_ref[...], 0.0)          # (TB, Hp) + (1, Hp) broadcast
    # linear2 (cast hidden back to the MXU compute dtype, accumulate in f32)
    y = jnp.dot(h.astype(w2_ref.dtype), w2_ref[...],
                preferred_element_type=jnp.float32)
    y = y + b2_ref[...]                            # (TB, Op) + (1, Op) broadcast
    o_ref[...] = y.astype(o_ref.dtype)


def pad_params(w1, b1, w2, b2, *, compute_dtype=jnp.float32):
    """Pad/cast the weights ONCE (outside the jitted forward).

    w1: (In, H), b1: (H,), w2: (H, Out), b2: (Out,) -> lane-dense 128-padded
    arrays.  Padded rows/cols are exact zeros so they contribute nothing.
    """
    cdt = jnp.dtype(compute_dtype)
    In, H = w1.shape
    Out = w2.shape[1]
    In_p, H_p, Out_p = _round_up(In, 128), _round_up(H, 128), _round_up(Out, 128)
    w1_p = jnp.pad(w1.astype(cdt), ((0, In_p - In), (0, H_p - H)))
    b1_p = jnp.pad(b1.astype(jnp.float32), (0, H_p - H)).reshape(1, H_p)
    w2_p = jnp.pad(w2.astype(cdt), ((0, H_p - H), (0, Out_p - Out)))
    b2_p = jnp.pad(b2.astype(jnp.float32), (0, Out_p - Out)).reshape(1, Out_p)
    return w1_p, b1_p, w2_p, b2_p


def linear_qnet_forward(x, w1_p, b1_p, w2_p, b2_p, *,
                        in_features, hidden_features, out_features,
                        block_b=256):
    """Fused 2-layer MLP forward. x: (B, In); *_p are pre-padded via pad_params."""
    B = x.shape[0]
    In_p, H_p = w1_p.shape
    Out_p = w2_p.shape[1]
    cdt = jnp.dtype(w1_p.dtype)
    out_dtype = x.dtype
    itemsize = cdt.itemsize
    out_itemsize = jnp.dtype(out_dtype).itemsize

    # Batch tile rounded to the dtype's sublane packing tile (f32:8, bf16:16, i8:32).
    sublane = max(8, 32 // itemsize)
    TB = min(_round_up(B, sublane), _round_up(block_b, sublane))
    B_p = _round_up(B, TB)

    # Only x is padded per call (weights were padded once at init).
    x_p = jnp.pad(x.astype(cdt),
                  ((0, B_p - B), (0, In_p - in_features)))

    # VMEM budget from the actual tiles: resident weights are single-buffered,
    # streamed x/out tiles are double-buffered.  Clamp to a sane range.
    resident_bytes = (In_p * H_p + H_p * Out_p) * itemsize + (H_p + Out_p) * 4
    streamed_bytes = 2 * TB * In_p * itemsize + 2 * TB * Out_p * out_itemsize
    vmem_limit = int(1.25 * (resident_bytes + streamed_bytes)) + (4 << 20)
    vmem_limit = min(max(vmem_limit, 16 << 20), 100 << 20)

    grid = (B_p // TB,)

    # Cost estimate from the true (unpadded) problem size.
    flops = 2 * B * in_features * hidden_features + 2 * B * hidden_features * out_features
    bytes_accessed = (
        B * in_features * itemsize
        + in_features * hidden_features * itemsize
        + hidden_features * out_features * itemsize
        + (hidden_features + out_features) * 4
        + B * out_features * out_itemsize
    )

    resident = pl.Buffered(1)   # constant index_map -> no double-buffering needed

    out_p = pl.pallas_call(
        qnet_kernel,
        out_shape=jax.ShapeDtypeStruct((B_p, Out_p), out_dtype),
        grid=grid,
        in_specs=[
            pl.BlockSpec((TB, In_p), lambda i: (i, 0)),        # x: streamed over batch
            pl.BlockSpec((In_p, H_p), lambda i: (0, 0), pipeline_mode=resident),
            pl.BlockSpec((1, H_p), lambda i: (0, 0), pipeline_mode=resident),
            pl.BlockSpec((H_p, Out_p), lambda i: (0, 0), pipeline_mode=resident),
            pl.BlockSpec((1, Out_p), lambda i: (0, 0), pipeline_mode=resident),
        ],
        out_specs=pl.BlockSpec((TB, Out_p), lambda i: (i, 0)),
        compiler_params=pltpu.CompilerParams(
            dimension_semantics=("parallel",),                 # megacore sharding
            vmem_limit_bytes=vmem_limit,
        ),
        cost_estimate=pl.CostEstimate(
            flops=flops, transcendentals=0, bytes_accessed=bytes_accessed),
    )(x_p, w1_p, b1_p, w2_p, b2_p)

    # Slice away padded batch rows and padded output lanes.
    return out_p[:B, :out_features]


def init_params(key, input_size, hidden_size, output_size, dtype=jnp.float32):
    # Deterministic synthetic init (uniform, PyTorch-Linear-style bound 1/sqrt(fan_in)).
    k1, k2, k3, k4 = jax.random.split(key, 4)
    bound1 = 1.0 / (input_size ** 0.5)
    bound2 = 1.0 / (hidden_size ** 0.5)
    w1 = jax.random.uniform(k1, (input_size, hidden_size), dtype, -bound1, bound1)
    b1 = jax.random.uniform(k2, (hidden_size,), dtype, -bound1, bound1)
    w2 = jax.random.uniform(k3, (hidden_size, output_size), dtype, -bound2, bound2)
    b2 = jax.random.uniform(k4, (output_size,), dtype, -bound2, bound2)
    return w1, b1, w2, b2


if __name__ == "__main__":
    key = jax.random.PRNGKey(0)
    kx, kp = jax.random.split(key)

    batch, input_size, hidden_size, output_size = 8, 16, 32, 4
    x = jax.random.normal(kx, (batch, input_size), jnp.float32)
    w1, b1, w2, b2 = init_params(kp, input_size, hidden_size, output_size)

    # Pure-JAX reference (same math as the PyTorch forward).
    ref = jnp.maximum(x @ w1 + b1, 0.0) @ w2 + b2

    fwd = jax.jit(functools.partial(
        linear_qnet_forward,
        in_features=input_size,
        hidden_features=hidden_size,
        out_features=output_size))

    # f32 compute path (exact-ish vs reference). Params padded ONCE, outside jit.
    params_f32 = pad_params(w1, b1, w2, b2, compute_dtype=jnp.float32)
    out_f32 = jax.block_until_ready(fwd(x, *params_f32))
    assert out_f32.shape == (batch, output_size)
    assert jnp.allclose(out_f32, ref, atol=1e-5, rtol=1e-5)

    # bf16 compute path for the v6e/v7x MXU (f32 accumulation -> loose tolerance).
    params_bf16 = pad_params(w1, b1, w2, b2, compute_dtype=jnp.bfloat16)
    out_bf16 = jax.block_until_ready(fwd(x, *params_bf16))
    assert out_bf16.shape == (batch, output_size)
    assert jnp.allclose(out_bf16.astype(jnp.float32), ref, atol=3e-2, rtol=3e-2)

    print("KERNEL_OK")
</pallas_src>

<mosaic_0001>
module attributes {stable_mosaic.version = 11 : i64} {
  func.func @qnet_kernel(%arg0: i32, %arg1: memref<8x128xf32, #tpu.memory_space<vmem>>, %arg2: memref<128x128xf32, #tpu.memory_space<vmem>>, %arg3: memref<1x128xf32, #tpu.memory_space<vmem>>, %arg4: memref<128x128xf32, #tpu.memory_space<vmem>>, %arg5: memref<1x128xf32, #tpu.memory_space<vmem>>, %arg6: memref<8x128xf32, #tpu.memory_space<vmem>>) attributes {dimension_semantics = [#tpu.dimension_semantics<parallel>], iteration_bounds = array<i64: 1>, scalar_prefetch = 0 : i64, scratch_operands = 0 : i64, tpu.core_type = #tpu.core_type<tc>, window_params = [{transform_indices = @transform_0, window_bounds = array<i64: 8, 128>}, {pipeline_mode = #tpu.pipeline_mode<synchronous>, transform_indices = @transform_1, window_bounds = array<i64: 128, 128>}, {pipeline_mode = #tpu.pipeline_mode<synchronous>, transform_indices = @transform_2, window_bounds = array<i64: 1, 128>}, {pipeline_mode = #tpu.pipeline_mode<synchronous>, transform_indices = @transform_3, window_bounds = array<i64: 128, 128>}, {pipeline_mode = #tpu.pipeline_mode<synchronous>, transform_indices = @transform_4, window_bounds = array<i64: 1, 128>}, {transform_indices = @transform_5, window_bounds = array<i64: 8, 128>}]} {
    %c0 = arith.constant 0 : index
    %c0_0 = arith.constant 0 : index
    %0 = vector.load %arg1[%c0, %c0_0] : memref<8x128xf32, #tpu.memory_space<vmem>>, vector<8x128xf32>
    %c0_1 = arith.constant 0 : index
    %c0_2 = arith.constant 0 : index
    %1 = vector.load %arg2[%c0_1, %c0_2] : memref<128x128xf32, #tpu.memory_space<vmem>>, vector<128x128xf32>
    %cst = arith.constant dense<0.000000e+00> : vector<8x128xf32>
    %2 = tpu.matmul %0, %1, %cst {dimension_numbers = #tpu.dot_dimension_numbers<[1], [0], [0], [1], [0, 0, 1, 1], [], []>} : vector<8x128xf32>, vector<128x128xf32>, vector<8x128xf32> -> vector<8x128xf32>
    %c0_3 = arith.constant 0 : index
    %c0_4 = arith.constant 0 : index
    %3 = vector.load %arg3[%c0_3, %c0_4] : memref<1x128xf32, #tpu.memory_space<vmem>>, vector<1x128xf32>
    %4 = vector.broadcast %3 : vector<1x128xf32> to vector<8x128xf32>
    %5 = arith.addf %2, %4 : vector<8x128xf32>
    %cst_5 = arith.constant 0.000000e+00 : f32
    %6 = vector.broadcast %cst_5 : f32 to vector<8x128xf32>
    %7 = arith.maximumf %5, %6 : vector<8x128xf32>
    %c0_6 = arith.constant 0 : index
    %c0_7 = arith.constant 0 : index
    %8 = vector.load %arg4[%c0_6, %c0_7] : memref<128x128xf32, #tpu.memory_space<vmem>>, vector<128x128xf32>
    %cst_8 = arith.constant dense<0.000000e+00> : vector<8x128xf32>
    %9 = tpu.matmul %7, %8, %cst_8 {dimension_numbers = #tpu.dot_dimension_numbers<[1], [0], [0], [1], [0, 0, 1, 1], [], []>} : vector<8x128xf32>, vector<128x128xf32>, vector<8x128xf32> -> vector<8x128xf32>
    %c0_9 = arith.constant 0 : index
    %c0_10 = arith.constant 0 : index
    %10 = vector.load %arg5[%c0_9, %c0_10] : memref<1x128xf32, #tpu.memory_space<vmem>>, vector<1x128xf32>
    %11 = vector.broadcast %10 : vector<1x128xf32> to vector<8x128xf32>
    %12 = arith.addf %9, %11 : vector<8x128xf32>
    %c0_11 = arith.constant 0 : index
    %c0_12 = arith.constant 0 : index
    %13 = vector.load %arg6[%c0_11, %c0_12] : memref<8x128xf32, #tpu.memory_space<vmem>>, vector<8x128xf32>
    tpu.vector_store %arg6[%c0_11, %c0_12], %12 {strides = array<i32>} : memref<8x128xf32, #tpu.memory_space<vmem>>, vector<8x128xf32>,
    return
  }
  func.func @transform_0(%arg0: i32) -> (i32, i32) {
    %c0_i32 = arith.constant 0 : i32
    %c0_i32_0 = arith.constant 0 : i32
    return %arg0, %c0_i32 : i32, i32
  }
  func.func @transform_1(%arg0: i32) -> (i32, i32) {
    %c0_i32 = arith.constant 0 : i32
    %c0_i32_0 = arith.constant 0 : i32
    %c0_i32_1 = arith.constant 0 : i32
    return %c0_i32, %c0_i32_0 : i32, i32
  }
  func.func @transform_2(%arg0: i32) -> (i32, i32) {
    %c0_i32 = arith.constant 0 : i32
    %c0_i32_0 = arith.constant 0 : i32
    %c0_i32_1 = arith.constant 0 : i32
    return %c0_i32, %c0_i32_0 : i32, i32
  }
  func.func @transform_3(%arg0: i32) -> (i32, i32) {
    %c0_i32 = arith.constant 0 : i32
    %c0_i32_0 = arith.constant 0 : i32
    %c0_i32_1 = arith.constant 0 : i32
    return %c0_i32, %c0_i32_0 : i32, i32
  }
  func.func @transform_4(%arg0: i32) -> (i32, i32) {
    %c0_i32 = arith.constant 0 : i32
    %c0_i32_0 = arith.constant 0 : i32
    %c0_i32_1 = arith.constant 0 : i32
    return %c0_i32, %c0_i32_0 : i32, i32
  }
  func.func @transform_5(%arg0: i32) -> (i32, i32) {
    %c0_i32 = arith.constant 0 : i32
    %c0_i32_0 = arith.constant 0 : i32
    return %arg0, %c0_i32 : i32, i32
  }
}

</mosaic_0001>

<llo_original>
// kernel: linear_qnet_forward.1
$region0: #{linear_qnet_forward.1}
  #allocation0 [shape = 'u32[]', space=smem, size = 0x4, offset = 0x4, fixed_abs, tag = 'smem constant byte address 0x4 - core index']
  #allocation1 [shape = 'u32[72,128]{1,0:T(1,128)}', space=vmem, size = 0x9000, scoped, tag = 'internal scratch']
  %s0 = inlined_call_operand.vmem [shape: f32[8,128], index: 0, kind: input, shape index: {}]
  %s1 = inlined_call_operand.hbm [shape: f32[128,128], index: 1, kind: input, shape index: {}]
  %s2 = inlined_call_operand.vmem [shape: f32[1,128], index: 2, kind: input, shape index: {}]
  %s3 = inlined_call_operand.hbm [shape: f32[128,128], index: 3, kind: input, shape index: {}]
  %s4 = inlined_call_operand.vmem [shape: f32[1,128], index: 4, kind: input, shape index: {}]
  %s5 = inlined_call_operand.vmem [shape: f32[8,128], index: 5, kind: output, shape index: {}]
  %s6 = sld [smem:[#allocation0]]
  $region38: #{linear_qnet_forward.1} parent=0
    _
  %s8 = ssub.s32 1, %s6
  %s9 = scalar_select 0, %s8, %s6
  $region1: #{linear_qnet_forward.1} parent=0
    #allocation2 [shape = 'u8[65536]{0}', space=vmem, size = 0x10000, scoped, tag = 'input window, operand 1, single buffered']
    #allocation3 [shape = 's32[1]{0}', space=sflag, size = 0x4, scoped, tag = 'scoped memory for linear_qnet_forward.1']
    #allocation4 [shape = 'u8[65536]{0}', space=vmem, size = 0x10000, scoped, tag = 'input window, operand 3, single buffered']
    #allocation5 [shape = 's32[1]{0}', space=sflag, size = 0x4, scoped, tag = 'scoped memory for linear_qnet_forward.1']
    %10 = vsyncpa [#allocation3], 0
    %11 = vsyncpa [#allocation5], 0
    // Predicated region
    $region2: #{linear_qnet_forward.1} parent=1 // pred_check
      _
    $region3: #{linear_qnet_forward.1} parent=1 // pred_check_branch
      %13 = sbr.rel (0) target = $region5
    $region4: #{linear_qnet_forward.1} parent=1 // pred_region
      _
    $region5: #{linear_qnet_forward.1} parent=1 // pred_fallthru
      _
    // Predicated region
    $region6: #{linear_qnet_forward.1} parent=1 // pred_check
      _
    $region7: #{linear_qnet_forward.1} parent=1 // pred_check_branch
      %15 = sbr.rel (0) target = $region9
    $region8: #{linear_qnet_forward.1} parent=1 // pred_region
      %17 = vsyncadd [#allocation3], 0
      %s18 = sshll.u32 %s1, 4
      %s19 = int_to_ptr.hbm [resolvable:$true] %s18
      %s20 = sshll.u32 [#allocation2], 4
      %s21 = int_to_ptr.vmem [resolvable:$true] %s20
      %26 = dma.hbm_to_vmem [thread:$0]  %s19, 2048, %s21, [#allocation3], 128, 128, 8
    $region9: #{linear_qnet_forward.1} parent=1 // pred_fallthru
      _
    // Predicated region
    $region10: #{linear_qnet_forward.1} parent=1 // pred_check
      _
    $region11: #{linear_qnet_forward.1} parent=1 // pred_check_branch
      %28 = sbr.rel (0) target = $region13
    $region12: #{linear_qnet_forward.1} parent=1 // pred_region
      _
    $region13: #{linear_qnet_forward.1} parent=1 // pred_fallthru
      _
    // Predicated region
    $region14: #{linear_qnet_forward.1} parent=1 // pred_check
      _
    $region15: #{linear_qnet_forward.1} parent=1 // pred_check_branch
      %30 = sbr.rel (0) target = $region17
    $region16: #{linear_qnet_forward.1} parent=1 // pred_region
      %32 = vsyncadd [#allocation5], 0
      %s33 = sshll.u32 %s3, 4
      %s34 = int_to_ptr.hbm [resolvable:$true] %s33
      %s35 = sshll.u32 [#allocation4], 4
      %s36 = int_to_ptr.vmem [resolvable:$true] %s35
      %41 = dma.hbm_to_vmem [thread:$0]  %s34, 2048, %s36, [#allocation5], 128, 128, 8
    $region17: #{linear_qnet_forward.1} parent=1 // pred_fallthru
      _
    // Predicated region
    $region18: #{linear_qnet_forward.1} parent=1 // pred_check
      _
    $region19: #{linear_qnet_forward.1} parent=1 // pred_check_branch
      %43 = sbr.rel (0) target = $region21
    $region20: #{linear_qnet_forward.1} parent=1 // pred_region
      _
    $region21: #{linear_qnet_forward.1} parent=1 // pred_fallthru
      _
    // Predicated region
    $region22: #{linear_qnet_forward.1} parent=1 // pred_check
      _
    $region23: #{linear_qnet_forward.1} parent=1 // pred_check_branch
      %45 = sbr.rel (0) target = $region25
    $region24: #{linear_qnet_forward.1} parent=1 // pred_region
      %47 = dma.done [#allocation3], 2048
    $region25: #{linear_qnet_forward.1} parent=1 // pred_fallthru
      _
    // Predicated region
    $region26: #{linear_qnet_forward.1} parent=1 // pred_check
      _
    $region27: #{linear_qnet_forward.1} parent=1 // pred_check_branch
      %49 = sbr.rel (0) target = $region29
    $region28: #{linear_qnet_forward.1} parent=1 // pred_region
      %51 = dma.done [#allocation5], 2048
    $region29: #{linear_qnet_forward.1} parent=1 // pred_fallthru
      _
    %v52 = vld [vmem:[%s0] sm:$0xff]
    %v53 = vld [vmem:[#allocation2] sm:$0xff]
    %v54 = vld [vmem:[#allocation2 + $0x8] sm:$0xff]
    %v55 = vld [vmem:[#allocation2 + $0x10] sm:$0xff]
    %v56 = vld [vmem:[#allocation2 + $0x18] sm:$0xff]
    %v57 = vld [vmem:[#allocation2 + $0x20] sm:$0xff]
    %v58 = vld [vmem:[#allocation2 + $0x28] sm:$0xff]
    %v59 = vld [vmem:[#allocation2 + $0x30] sm:$0xff]
    %v60 = vld [vmem:[#allocation2 + $0x38] sm:$0xff]
    %v61 = vld [vmem:[#allocation2 + $0x40] sm:$0xff]
    %v62 = vld [vmem:[#allocation2 + $0x48] sm:$0xff]
    %v63 = vld [vmem:[#allocation2 + $0x50] sm:$0xff]
    %v64 = vld [vmem:[#allocation2 + $0x58] sm:$0xff]
    %v65 = vld [vmem:[#allocation2 + $0x60] sm:$0xff]
    %v66 = vld [vmem:[#allocation2 + $0x68] sm:$0xff]
    %v67 = vld [vmem:[#allocation2 + $0x70] sm:$0xff]
    %v68 = vld [vmem:[#allocation2 + $0x78] sm:$0xff]
    %v69 = vld [vmem:[%s2] sm:$0x1]
    %v71 = vperm.slane %v69, 0
    %73 = vmatpush.msra.mxu0 %v68
    %74 = vmatpush.msra.mxu0 %v67
    %75 = vmatpush.msra.mxu0 %v66
    %76 = vmatpush.msra.mxu0 %v65
    %77 = vmatpush.msra.mxu0 %v64
    %78 = vmatpush.msra.mxu0 %v63
    %79 = vmatpush.msra.mxu0 %v62
    %80 = vmatpush.msra.mxu0 %v61
    %81 = vmatpush.msra.mxu0 %v60
    %82 = vmatpush.msra.mxu0 %v59
    %83 = vmatpush.msra.mxu0 %v58
    %84 = vmatpush.msra.mxu0 %v57
    %85 = vmatpush.msra.mxu0 %v56
    %86 = vmatpush.msra.mxu0 %v55
    %87 = vmatpush.msra.mxu0 %v54
    %88 = vmatpush.msra.mxu0 %v53
    %89 = vmatmul.f32.gmra.mxu0 %v52
    %v90 = vpop.f32.mrf.mxu0
    %v91 = vadd.f32 %v71, %v90
    %92 = vdwg.mxu0
    %v93 = vmax.f32 %v91, 0.0
    %v94 = vld [vmem:[#allocation4] sm:$0xff]
    %v95 = vld [vmem:[#allocation4 + $0x8] sm:$0xff]
    %v96 = vld [vmem:[#allocation4 + $0x10] sm:$0xff]
    %v97 = vld [vmem:[#allocation4 + $0x18] sm:$0xff]
    %v98 = vld [vmem:[#allocation4 + $0x20] sm:$0xff]
    %v99 = vld [vmem:[#allocation4 + $0x28] sm:$0xff]
    %v100 = vld [vmem:[#allocation4 + $0x30] sm:$0xff]
    %v101 = vld [vmem:[#allocation4 + $0x38] sm:$0xff]
    %v102 = vld [vmem:[#allocation4 + $0x40] sm:$0xff]
    %v103 = vld [vmem:[#allocation4 + $0x48] sm:$0xff]
    %v104 = vld [vmem:[#allocation4 + $0x50] sm:$0xff]
    %v105 = vld [vmem:[#allocation4 + $0x58] sm:$0xff]
    %v106 = vld [vmem:[#allocation4 + $0x60] sm:$0xff]
    %v107 = vld [vmem:[#allocation4 + $0x68] sm:$0xff]
    %v108 = vld [vmem:[#allocation4 + $0x70] sm:$0xff]
    %v109 = vld [vmem:[#allocation4 + $0x78] sm:$0xff]
    %v110 = vld [vmem:[%s4] sm:$0x1]
    %v112 = vperm.slane %v110, 0
    %114 = vmatpush.msra.mxu0 %v109
    %115 = vmatpush.msra.mxu0 %v108
    %116 = vmatpush.msra.mxu0 %v107
    %117 = vmatpush.msra.mxu0 %v106
    %118 = vmatpush.msra.mxu0 %v105
    %119 = vmatpush.msra.mxu0 %v104
    %120 = vmatpush.msra.mxu0 %v103
    %121 = vmatpush.msra.mxu0 %v102
    %122 = vmatpush.msra.mxu0 %v101
    %123 = vmatpush.msra.mxu0 %v100
    %124 = vmatpush.msra.mxu0 %v99
    %125 = vmatpush.msra.mxu0 %v98
    %126 = vmatpush.msra.mxu0 %v97
    %127 = vmatpush.msra.mxu0 %v96
    %128 = vmatpush.msra.mxu0 %v95
    %129 = vmatpush.msra.mxu0 %v94
    %130 = vmatmul.f32.gmra.mxu0 %v93
    %v131 = vpop.f32.mrf.mxu0
    %v132 = vadd.f32 %v112, %v131
    %133 = vdwg.mxu0
    %134 = vst [vmem:[%s5] sm:$0xff] %v132
    // Predicated region
    $region30: #{linear_qnet_forward.1} parent=1 // pred_check
      _
    $region31: #{linear_qnet_forward.1} parent=1 // pred_check_branch
      %136 = sbr.rel (0) target = $region33
    $region32: #{linear_qnet_forward.1} parent=1 // pred_region
      _
    $region33: #{linear_qnet_forward.1} parent=1 // pred_fallthru
      _
    // Predicated region
    $region34: #{linear_qnet_forward.1} parent=1 // pred_check
      _
    $region35: #{linear_qnet_forward.1} parent=1 // pred_check_branch
      %138 = sbr.rel (0) target = $region37
    $region36: #{linear_qnet_forward.1} parent=1 // pred_region
      _
    $region37: #{linear_qnet_forward.1} parent=1 // pred_fallthru
      _
    %139 = vsyncpa [#allocation3], 1
    %140 = vsyncpa [#allocation5], 1

</llo_original>
